<compile_context>
chip_gen: v7x
topology: tpu7x:2x2x1
jax: 0.10.0
libtpu: 0.0.40
codegen_flags: <defaults>
</compile_context>

<pallas_src>
import functools

import jax
import jax.numpy as jnp
from jax.experimental import pallas as pl
from jax.experimental.pallas import tpu as pltpu

_LANES = 128
_ACC_ROWS = 64                     # 8 f32 vregs -> 8 independent accumulate chains
_TILE_BYTES_TARGET = 2 * 1024 * 1024  # ~2 MiB of DMA per input per grid step


def _default_nsplit():
    """2 on chips with two TensorCores (v7x/v4/v5p), else 1."""
    try:
        kind = str(jax.devices()[0].device_kind).lower()
    except Exception:
        return 1
    return 2 if any(t in kind for t in ("v7", "v4", "v5p")) else 1


def _mse_partial_kernel(pred_ref, real_ref, out_ref, *, rows, tile_rows, tps,
                        need_mask):
    """Accumulates per-lane partial sums of (real-pred)^2 into out_ref (1,64,128)."""
    i = pl.program_id(0)
    j = pl.program_id(1)

    @pl.when(j == 0)
    def _():
        out_ref[...] = jnp.zeros_like(out_ref)

    d = real_ref[...].astype(jnp.float32) - pred_ref[...].astype(jnp.float32)

    def accum(dv):
        sq = dv * dv
        # Collapse rows onto the (64, 128)-shaped partial sums: 8 independent
        # per-vreg add chains of length tile_rows/64 (pure VPU, no XLU).
        out_ref[...] += sq.reshape(tile_rows // _ACC_ROWS, _ACC_ROWS,
                                   _LANES).sum(axis=0)[None]

    if need_mask:
        row0 = (i * tps + j) * tile_rows

        # Only tiles that straddle (or lie past) the end of the array pay for
        # the iota/compare/select; interior tiles take the cheap path below.
        @pl.when(row0 + tile_rows > rows)
        def _():
            rid = jax.lax.broadcasted_iota(jnp.int32, (tile_rows, 1), 0) + row0
            # Mask `d` BEFORE squaring so garbage past the array edge (partial
            # DMA / clamped overshoot tiles) never propagates.
            accum(jnp.where(rid < rows, d, 0.0))

        @pl.when(row0 + tile_rows <= rows)
        def _():
            accum(d)
    else:
        accum(d)


def mse(pred, real, *, tile_rows=None, nsplit=None):
    assert pred.shape == real.shape, (pred.shape, real.shape)
    n = pred.size
    if n == 0:
        # torch mean over an empty tensor is 0/0 = NaN.
        return jnp.float32(jnp.nan)

    flat_p = pred.reshape(-1)
    flat_r = real.reshape(-1)

    # Ragged tail (< 128 elements): handled in plain JAX.
    main = (n // _LANES) * _LANES
    tail_sq = jnp.float32(0.0)
    if main < n:
        # TODO(synk): when numel % 128 != 0 the prefix slice below may make XLA
        # materialize a copy of the main slab (extra HBM traffic); zero-copy
        # ragged handling would need in-kernel element masking on the 1-D buffer.
        tp = flat_p[main:].astype(jnp.float32)
        tr = flat_r[main:].astype(jnp.float32)
        tail_sq = jnp.sum((tr - tp) ** 2)
        flat_p = flat_p[:main]
        flat_r = flat_r[:main]
    if main == 0:
        return (tail_sq / n).astype(jnp.float32)

    rows = main // _LANES
    p2d = flat_p.reshape(rows, _LANES)
    r2d = flat_r.reshape(rows, _LANES)

    itemsize = jnp.dtype(p2d.dtype).itemsize

    if tile_rows is None:
        # ~2 MiB of DMA per input per step, independent of dtype
        # (f32->4096 rows, bf16->8192, int8->16384). Double-buffered total
        # stays at 8 MiB, under v5e's 16 MiB default scoped VMEM.
        tile_rows = _TILE_BYTES_TARGET // (_LANES * itemsize)
    tile_rows = max(_ACC_ROWS, (tile_rows // _ACC_ROWS) * _ACC_ROWS)

    if rows < _ACC_ROWS:
        # Tiny input: pad this <32 KiB slab up to one accumulator block; the
        # zero rows contribute 0 to the sum.
        p2d = jnp.pad(p2d, ((0, _ACC_ROWS - rows), (0, 0)))
        r2d = jnp.pad(r2d, ((0, _ACC_ROWS - rows), (0, 0)))
        rows_alloc = _ACC_ROWS
        tile_rows = _ACC_ROWS
    else:
        rows_alloc = rows
        tile_rows = max(_ACC_ROWS,
                        min(tile_rows, (rows // _ACC_ROWS) * _ACC_ROWS))

    if nsplit is None:
        nsplit = _default_nsplit()

    num_tiles = pl.cdiv(rows_alloc, tile_rows)
    if num_tiles < nsplit:
        nsplit = 1
    tps = pl.cdiv(num_tiles, nsplit)          # row-tiles per split
    need_mask = (nsplit * tps * tile_rows != rows_alloc)
    last_tile = num_tiles - 1

    kernel = functools.partial(
        _mse_partial_kernel,
        rows=rows_alloc, tile_rows=tile_rows, tps=tps, need_mask=need_mask)

    def in_index_map(i, j):
        # Clamp so overshoot steps (uneven split) re-read the last valid tile;
        # their contribution is masked to zero inside the kernel.
        return (jnp.minimum(i * tps + j, last_tile), 0)

    cost = pl.CostEstimate(
        flops=3 * main,
        transcendentals=0,
        bytes_accessed=2 * main * itemsize + nsplit * _ACC_ROWS * _LANES * 4)

    partials = pl.pallas_call(
        kernel,
        out_shape=jax.ShapeDtypeStruct((nsplit, _ACC_ROWS, _LANES), jnp.float32),
        grid_spec=pltpu.PrefetchScalarGridSpec(
            num_scalar_prefetch=0,
            grid=(nsplit, tps),
            in_specs=[
                pl.BlockSpec((tile_rows, _LANES), in_index_map),
                pl.BlockSpec((tile_rows, _LANES), in_index_map),
            ],
            out_specs=pl.BlockSpec((1, _ACC_ROWS, _LANES), lambda i, j: (i, 0, 0)),
        ),
        compiler_params=pltpu.CompilerParams(
            dimension_semantics=("parallel", "arbitrary")),
        cost_estimate=cost,
    )(p2d, r2d)

    total = jnp.sum(partials) + tail_sq
    return (total / n).astype(jnp.float32)


def _ref_mse(pred, real):
    d = real.astype(jnp.float32) - pred.astype(jnp.float32)
    return jnp.sum(d * d) / pred.size


if __name__ == "__main__":
    key = jax.random.PRNGKey(0)

    # Small shapes consistent with the module's forward (any matching shapes).
    k1, k2 = jax.random.split(key)
    pred = jax.random.normal(k1, (2, 4, 16, 16), dtype=jnp.float32)
    real = jax.random.normal(k2, (2, 4, 16, 16), dtype=jnp.float32)
    out = mse(pred, real)
    jax.block_until_ready(out)
    ref = _ref_mse(pred, real)
    assert jnp.allclose(out, ref, rtol=1e-5, atol=1e-6), (out, ref)

    # Exercise the partial-tile-mask / ragged-tail paths.
    k3, k4 = jax.random.split(k1)
    pred2 = jax.random.normal(k3, (3, 7, 33, 65), dtype=jnp.float32)
    real2 = jax.random.normal(k4, (3, 7, 33, 65), dtype=jnp.float32)
    out2 = mse(pred2, real2)
    jax.block_until_ready(out2)
    ref2 = _ref_mse(pred2, real2)
    assert jnp.allclose(out2, ref2, rtol=1e-5, atol=1e-6), (out2, ref2)

    # Native-dtype (bf16) streaming path.
    k5, k6 = jax.random.split(k2)
    pred3 = jax.random.normal(k5, (2, 8, 32, 32), dtype=jnp.bfloat16)
    real3 = jax.random.normal(k6, (2, 8, 32, 32), dtype=jnp.bfloat16)
    out3 = mse(pred3, real3)
    jax.block_until_ready(out3)
    ref3 = _ref_mse(pred3, real3)
    assert jnp.allclose(out3, ref3, rtol=1e-4, atol=1e-6), (out3, ref3)

    print("KERNEL_OK")
</pallas_src>

<mosaic_0001>
module attributes {stable_mosaic.version = 11 : i64} {
  func.func @_mse_partial_kernel(%arg0: i32, %arg1: i32, %arg2: memref<64x128xf32, #tpu.memory_space<vmem>>, %arg3: memref<64x128xf32, #tpu.memory_space<vmem>>, %arg4: memref<1x64x128xf32, #tpu.memory_space<vmem>>) attributes {dimension_semantics = [#tpu.dimension_semantics<parallel>, #tpu.dimension_semantics<arbitrary>], iteration_bounds = array<i64: 1, 1>, scalar_prefetch = 0 : i64, scratch_operands = 0 : i64, tpu.core_type = #tpu.core_type<tc>, window_params = [{transform_indices = @transform_0, window_bounds = array<i64: 64, 128>}, {transform_indices = @transform_1, window_bounds = array<i64: 64, 128>}, {transform_indices = @transform_2, window_bounds = array<i64: 1, 64, 128>}]} {
    %c0_i32 = arith.constant 0 : i32
    %0 = arith.cmpi eq, %arg1, %c0_i32 : i32
    %1 = arith.extui %0 : i1 to i32
    %c0_i32_0 = arith.constant 0 : i32
    %2 = arith.cmpi ne, %1, %c0_i32_0 : i32
    scf.if %2 {
      %cst_10 = arith.constant 0.000000e+00 : f32
      %13 = vector.broadcast %cst_10 : f32 to vector<1x64x128xf32>
      %c0_11 = arith.constant 0 : index
      %c0_12 = arith.constant 0 : index
      %c0_13 = arith.constant 0 : index
      %14 = vector.load %arg4[%c0_11, %c0_12, %c0_13] : memref<1x64x128xf32, #tpu.memory_space<vmem>>, vector<1x64x128xf32>
      tpu.vector_store %arg4[%c0_11, %c0_12, %c0_13], %13 {strides = array<i32>} : memref<1x64x128xf32, #tpu.memory_space<vmem>>, vector<1x64x128xf32>,
    } else {
    }
    %c0 = arith.constant 0 : index
    %c0_1 = arith.constant 0 : index
    %3 = vector.load %arg3[%c0, %c0_1] : memref<64x128xf32, #tpu.memory_space<vmem>>, vector<64x128xf32>
    %c0_2 = arith.constant 0 : index
    %c0_3 = arith.constant 0 : index
    %4 = vector.load %arg2[%c0_2, %c0_3] : memref<64x128xf32, #tpu.memory_space<vmem>>, vector<64x128xf32>
    %5 = arith.subf %3, %4 : vector<64x128xf32>
    %6 = arith.mulf %5, %5 : vector<64x128xf32>
    %c0_4 = arith.constant 0 : index
    %c0_5 = arith.constant 0 : index
    %c0_6 = arith.constant 0 : index
    %7 = vector.load %arg4[%c0_4, %c0_5, %c0_6] : memref<1x64x128xf32, #tpu.memory_space<vmem>>, vector<1x64x128xf32>
    %8 = vector.shape_cast %6 : vector<64x128xf32> to vector<1x64x128xf32>
    %cst = arith.constant dense<0.000000e+00> : vector<64x128xf32>
    %9 = vector.multi_reduction <add>, %8, %cst [0] : vector<1x64x128xf32> to vector<64x128xf32>
    %10 = vector.shape_cast %9 : vector<64x128xf32> to vector<1x64x128xf32>
    %11 = arith.addf %7, %10 : vector<1x64x128xf32>
    %c0_7 = arith.constant 0 : index
    %c0_8 = arith.constant 0 : index
    %c0_9 = arith.constant 0 : index
    %12 = vector.load %arg4[%c0_7, %c0_8, %c0_9] : memref<1x64x128xf32, #tpu.memory_space<vmem>>, vector<1x64x128xf32>
    tpu.vector_store %arg4[%c0_7, %c0_8, %c0_9], %11 {strides = array<i32>} : memref<1x64x128xf32, #tpu.memory_space<vmem>>, vector<1x64x128xf32>,
    return
  }
  func.func @transform_0(%arg0: i32, %arg1: i32) -> (i32, i32) {
    %c1_i32 = arith.constant 1 : i32
    %0 = arith.muli %arg0, %c1_i32 : i32
    %1 = arith.addi %0, %arg1 : i32
    %c0_i32 = arith.constant 0 : i32
    %2 = arith.minsi %1, %c0_i32 : i32
    %c0_i32_0 = arith.constant 0 : i32
    %c0_i32_1 = arith.constant 0 : i32
    return %2, %c0_i32_0 : i32, i32
  }
  func.func @transform_1(%arg0: i32, %arg1: i32) -> (i32, i32) {
    %c1_i32 = arith.constant 1 : i32
    %0 = arith.muli %arg0, %c1_i32 : i32
    %1 = arith.addi %0, %arg1 : i32
    %c0_i32 = arith.constant 0 : i32
    %2 = arith.minsi %1, %c0_i32 : i32
    %c0_i32_0 = arith.constant 0 : i32
    %c0_i32_1 = arith.constant 0 : i32
    return %2, %c0_i32_0 : i32, i32
  }
  func.func @transform_2(%arg0: i32, %arg1: i32) -> (i32, i32, i32) {
    %c0_i32 = arith.constant 0 : i32
    %c0_i32_0 = arith.constant 0 : i32
    %c0_i32_1 = arith.constant 0 : i32
    return %arg0, %c0_i32, %c0_i32_0 : i32, i32, i32
  }
}

</mosaic_0001>

<llo_original>
// kernel: tpu_custom_call.1
$region0: #{tpu_custom_call.1}
  #allocation0 [shape = 'u32[]', space=smem, size = 0x4, offset = 0x4, fixed_abs, tag = 'smem constant byte address 0x4 - core index']
  #allocation1 [shape = 'u32[144,128]{1,0:T(1,128)}', space=vmem, size = 0x12000, scoped, tag = 'internal scratch']
  %s0 = inlined_call_operand.hbm [shape: f32[64,128], index: 0, kind: input, shape index: {}]
  %s1 = inlined_call_operand.hbm [shape: f32[64,128], index: 1, kind: input, shape index: {}]
  %s2 = inlined_call_operand.hbm [shape: f32[1,64,128], index: 2, kind: output, shape index: {}]
  %s3 = sld [smem:[#allocation0]]
  $region30: #{tpu_custom_call.1} parent=0
    _
  %s5 = ssub.s32 1, %s3
  %s6 = scalar_select 0, %s5, %s3
  $region1: #{tpu_custom_call.1} parent=0
    #allocation2 [shape = 'u8[32768]{0}', space=vmem, size = 0x8000, scoped, tag = 'input window, operand 0, single buffered']
    #allocation3 [shape = 's32[1]{0}', space=sflag, size = 0x4, scoped, tag = 'scoped memory for tpu_custom_call.1']
    #allocation4 [shape = 's32[1]{0}', space=sflag, size = 0x4, scoped, tag = 'scoped memory for tpu_custom_call.1']
    #allocation5 [shape = 'u8[32768]{0}', space=vmem, size = 0x8000, scoped, tag = 'input window, operand 1, single buffered']
    #allocation6 [shape = 's32[1]{0}', space=sflag, size = 0x4, scoped, tag = 'scoped memory for tpu_custom_call.1']
    #allocation7 [shape = 'u8[32768]{0}', space=vmem, size = 0x8000, scoped, tag = 'output window, operand 0, single buffered']
    %7 = vsyncpa [#allocation3], 0
    %8 = vsyncpa [#allocation6], 0
    %9 = vsyncpa [#allocation4], 0
    // Predicated region
    $region2: #{tpu_custom_call.1} parent=1 // pred_check
      _
    $region3: #{tpu_custom_call.1} parent=1 // pred_check_branch
      %11 = sbr.rel (0) target = $region5
    $region4: #{tpu_custom_call.1} parent=1 // pred_region
      %s12 = sadd.s32 0, 0
      %p13 = scmp.lt.s32.totalorder %s12, 0
      %s14 = scalar_select %p13, %s12, 0
      %s15 = smul.u32 8, %s14
      %s17 = ssub.s32 1024, 1024
      %18 = vsyncadd [#allocation3], %s17
      %s19 = smul.addr %s15, 128
      %s20 = scalar_lea.hbm %s0, %s19
      %s21 = sshll.u32 [#allocation2], 4
      %s22 = int_to_ptr.vmem [resolvable:$true] %s21
      %27 = dma.hbm_to_vmem [thread:$0]  %s20, 1024, %s22, [#allocation3], 128, 128, 8
    $region5: #{tpu_custom_call.1} parent=1 // pred_fallthru
      _
    // Predicated region
    $region6: #{tpu_custom_call.1} parent=1 // pred_check
      _
    $region7: #{tpu_custom_call.1} parent=1 // pred_check_branch
      %29 = sbr.rel (0) target = $region9
    $region8: #{tpu_custom_call.1} parent=1 // pred_region
      %s30 = sadd.s32 0, 0
      %p31 = scmp.lt.s32.totalorder %s30, 0
      %s32 = scalar_select %p31, %s30, 0
      %s33 = smul.u32 8, %s32
      %s35 = ssub.s32 1024, 1024
      %36 = vsyncadd [#allocation6], %s35
      %s37 = smul.addr %s33, 128
      %s38 = scalar_lea.hbm %s1, %s37
      %s39 = sshll.u32 [#allocation5], 4
      %s40 = int_to_ptr.vmem [resolvable:$true] %s39
      %45 = dma.hbm_to_vmem [thread:$0]  %s38, 1024, %s40, [#allocation6], 128, 128, 8
    $region9: #{tpu_custom_call.1} parent=1 // pred_fallthru
      _
    // Predicated region
    $region10: #{tpu_custom_call.1} parent=1 // pred_check
      _
    $region11: #{tpu_custom_call.1} parent=1 // pred_check_branch
      %47 = sbr.rel (0) target = $region13
    $region12: #{tpu_custom_call.1} parent=1 // pred_region
      %48 = dma.done [#allocation3], 1024
    $region13: #{tpu_custom_call.1} parent=1 // pred_fallthru
      _
    // Predicated region
    $region14: #{tpu_custom_call.1} parent=1 // pred_check
      _
    $region15: #{tpu_custom_call.1} parent=1 // pred_check_branch
      %50 = sbr.rel (0) target = $region17
    $region16: #{tpu_custom_call.1} parent=1 // pred_region
      %51 = dma.done [#allocation6], 1024
    $region17: #{tpu_custom_call.1} parent=1 // pred_fallthru
      _
    %s52 = sadd.s32 0, 0
    %p53 = scmp.lt.s32.totalorder %s52, 0
    %s54 = scalar_select %p53, %s52, 0
    %s55 = smul.u32 8, %s54
    %s56 = sadd.s32 0, 0
    %p57 = scmp.lt.s32.totalorder %s56, 0
    %s58 = scalar_select %p57, %s56, 0
    %s59 = smul.u32 8, %s58
    %p60 = scmp.eq.s32.totalorder 0, 0
    // Predicated region
    $region18: #{tpu_custom_call.1} parent=1 // pred_check
      %p61 = pneg %p60
    $region19: #{tpu_custom_call.1} parent=1 // pred_check_branch
      %63 = sbr.rel (%p61) target = $region21
    $region20: #{tpu_custom_call.1} parent=1 // pred_region
      %64 = vst [vmem:[#allocation7] sm:$0xff] 0.0
      %65 = vst [vmem:[#allocation7 + $0x8] sm:$0xff] 0.0
      %66 = vst [vmem:[#allocation7 + $0x10] sm:$0xff] 0.0
      %67 = vst [vmem:[#allocation7 + $0x18] sm:$0xff] 0.0
      %68 = vst [vmem:[#allocation7 + $0x20] sm:$0xff] 0.0
      %69 = vst [vmem:[#allocation7 + $0x28] sm:$0xff] 0.0
      %70 = vst [vmem:[#allocation7 + $0x30] sm:$0xff] 0.0
      %71 = vst [vmem:[#allocation7 + $0x38] sm:$0xff] 0.0
    $region21: #{tpu_custom_call.1} parent=1 // pred_fallthru
      _
    %v72 = vld [vmem:[#allocation5] sm:$0xff]
    %v73 = vld [vmem:[#allocation5 + $0x8] sm:$0xff]
    %v74 = vld [vmem:[#allocation5 + $0x10] sm:$0xff]
    %v75 = vld [vmem:[#allocation5 + $0x18] sm:$0xff]
    %v76 = vld [vmem:[#allocation5 + $0x20] sm:$0xff]
    %v77 = vld [vmem:[#allocation5 + $0x28] sm:$0xff]
    %v78 = vld [vmem:[#allocation5 + $0x30] sm:$0xff]
    %v79 = vld [vmem:[#allocation5 + $0x38] sm:$0xff]
    %v80 = vld [vmem:[#allocation2] sm:$0xff]
    %v81 = vld [vmem:[#allocation2 + $0x8] sm:$0xff]
    %v82 = vld [vmem:[#allocation2 + $0x10] sm:$0xff]
    %v83 = vld [vmem:[#allocation2 + $0x18] sm:$0xff]
    %v84 = vld [vmem:[#allocation2 + $0x20] sm:$0xff]
    %v85 = vld [vmem:[#allocation2 + $0x28] sm:$0xff]
    %v86 = vld [vmem:[#allocation2 + $0x30] sm:$0xff]
    %v87 = vld [vmem:[#allocation2 + $0x38] sm:$0xff]
    %v88 = vsub.f32 %v72, %v80
    %v89 = vsub.f32 %v73, %v81
    %v90 = vsub.f32 %v74, %v82
    %v91 = vsub.f32 %v75, %v83
    %v92 = vsub.f32 %v76, %v84
    %v93 = vsub.f32 %v77, %v85
    %v94 = vsub.f32 %v78, %v86
    %v95 = vsub.f32 %v79, %v87
    %v96 = vmul.f32 %v88, %v88
    %v97 = vmul.f32 %v89, %v89
    %v98 = vmul.f32 %v90, %v90
    %v99 = vmul.f32 %v91, %v91
    %v100 = vmul.f32 %v92, %v92
    %v101 = vmul.f32 %v93, %v93
    %v102 = vmul.f32 %v94, %v94
    %v103 = vmul.f32 %v95, %v95
    %v104 = vld [vmem:[#allocation7] sm:$0xff]
    %v105 = vld [vmem:[#allocation7 + $0x8] sm:$0xff]
    %v106 = vld [vmem:[#allocation7 + $0x10] sm:$0xff]
    %v107 = vld [vmem:[#allocation7 + $0x18] sm:$0xff]
    %v108 = vld [vmem:[#allocation7 + $0x20] sm:$0xff]
    %v109 = vld [vmem:[#allocation7 + $0x28] sm:$0xff]
    %v110 = vld [vmem:[#allocation7 + $0x30] sm:$0xff]
    %v111 = vld [vmem:[#allocation7 + $0x38] sm:$0xff]
    %v112 = vadd.f32 %v96, 0.0
    %v113 = vadd.f32 %v97, 0.0
    %v114 = vadd.f32 %v98, 0.0
    %v115 = vadd.f32 %v99, 0.0
    %v116 = vadd.f32 %v100, 0.0
    %v117 = vadd.f32 %v101, 0.0
    %v118 = vadd.f32 %v102, 0.0
    %v119 = vadd.f32 %v103, 0.0
    %v120 = vadd.f32 %v104, %v112
    %v121 = vadd.f32 %v105, %v113
    %v122 = vadd.f32 %v106, %v114
    %v123 = vadd.f32 %v107, %v115
    %v124 = vadd.f32 %v108, %v116
    %v125 = vadd.f32 %v109, %v117
    %v126 = vadd.f32 %v110, %v118
    %v127 = vadd.f32 %v111, %v119
    %128 = vst [vmem:[#allocation7] sm:$0xff] %v120
    %129 = vst [vmem:[#allocation7 + $0x8] sm:$0xff] %v121
    %130 = vst [vmem:[#allocation7 + $0x10] sm:$0xff] %v122
    %131 = vst [vmem:[#allocation7 + $0x18] sm:$0xff] %v123
    %132 = vst [vmem:[#allocation7 + $0x20] sm:$0xff] %v124
    %133 = vst [vmem:[#allocation7 + $0x28] sm:$0xff] %v125
    %134 = vst [vmem:[#allocation7 + $0x30] sm:$0xff] %v126
    %135 = vst [vmem:[#allocation7 + $0x38] sm:$0xff] %v127
    // Predicated region
    $region22: #{tpu_custom_call.1} parent=1 // pred_check
      _
    $region23: #{tpu_custom_call.1} parent=1 // pred_check_branch
      %137 = sbr.rel (0) target = $region25
    $region24: #{tpu_custom_call.1} parent=1 // pred_region
      %s139 = ssub.s32 1024, 1024
      %140 = vsyncadd [#allocation4], %s139
      %s141 = sshll.u32 [#allocation7], 4
      %s142 = int_to_ptr.vmem [resolvable:$true] %s141
      %147 = dma.vmem_to_hbm [thread:$0]  %s142, 1024, %s2, [#allocation4], 128, 128, 8
    $region25: #{tpu_custom_call.1} parent=1 // pred_fallthru
      _
    // Predicated region
    $region26: #{tpu_custom_call.1} parent=1 // pred_check
      _
    $region27: #{tpu_custom_call.1} parent=1 // pred_check_branch
      %149 = sbr.rel (0) target = $region29
    $region28: #{tpu_custom_call.1} parent=1 // pred_region
      %150 = dma.done [#allocation4], 1024
    $region29: #{tpu_custom_call.1} parent=1 // pred_fallthru
      _
    %151 = vsyncpa [#allocation3], 1
    %152 = vsyncpa [#allocation6], 1
    %153 = vsyncpa [#allocation4], 1

</llo_original>
